<compile_context>
chip_gen: v6e
topology: v6e:2x2x1
jax: 0.10.0
libtpu: 0.0.40
codegen_flags: <defaults>
</compile_context>

<pallas_src>
import jax
import jax.numpy as jnp
from jax.experimental import pallas as pl
from jax.experimental.pallas import tpu as pltpu


# -----------------------------------------------------------------------------
# Kernel
# -----------------------------------------------------------------------------
def _city_embed_kernel(x_ref, w_ref, b_ref, o_ref):
    # x_ref: (Bt, N*In)   flattened coords for Bt batch rows
    # w_ref: (N*In, N*E)  block-diagonal fused depot/city weights (resident)
    # b_ref: (1, N*E)     fused bias (resident)
    # o_ref: (Bt, N*E)    lane-dense flattened embeddings
    o_ref[...] = (
        jnp.dot(x_ref[...], w_ref[...], preferred_element_type=jnp.float32)
        + b_ref[...]
    ).astype(o_ref.dtype)


# -----------------------------------------------------------------------------
# Fused parameter construction (cacheable when weights are static)
# -----------------------------------------------------------------------------
def make_fused_params(w_depot, b_depot, w_city, b_city, n_cities):
    """Block-diagonal fused weight [N*In, N*E] + fused bias [1, N*E].

    Block n is w_depot for n == 0 and w_city for n >= 1.  Built with N static
    slice writes (no [N, In, N, E] intermediate).  Precompute once and reuse
    across forward calls when the weights are fixed (inference).
    """
    In, E = w_depot.shape
    N = n_cities
    w_big = jnp.zeros((N * In, N * E), dtype=w_depot.dtype)
    for n in range(N):
        blk = w_depot if n == 0 else w_city
        w_big = w_big.at[n * In:(n + 1) * In, n * E:(n + 1) * E].set(blk)
    b_big = jnp.concatenate([b_depot, jnp.tile(b_city, N - 1)]).reshape(1, N * E)
    return w_big, b_big


# -----------------------------------------------------------------------------
# Tiling policy
# -----------------------------------------------------------------------------
_VMEM_LIMIT_BYTES = 32 << 20   # explicitly requested scoped-VMEM limit
_VMEM_TILE_BUDGET = 26 << 20   # headroom for resident weights / compiler scratch
_MAX_BLOCK_ROWS = 8192         # target rows/step at NE=256 f32 (~18 MiB buffered)


def _pick_block_rows(B, in_row_bytes, out_row_bytes, weight_bytes,
                     block_rows=None):
    """Batch rows processed per grid step."""
    if block_rows is not None:                      # explicit override (tests)
        bt = min(block_rows, B)
        return bt if bt == B else max(8, (bt // 8) * 8)

    # NE-aware VMEM cap: 2-deep buffering of input + output tiles (+10% slack)
    # plus the resident fused weights must fit the scoped-VMEM tile budget.
    budget = max(_VMEM_TILE_BUDGET - weight_bytes, 1 << 20)
    cap = int(budget / (2 * (in_row_bytes + out_row_bytes) * 1.1))
    cap = max(8, min(_MAX_BLOCK_ROWS, (cap // 8) * 8))

    if B <= cap:
        if B >= 64:
            # >=2 grid steps so the batch axis can shard across both v7x TCs.
            return min(cap, ((B + 15) // 16) * 8)   # ~ceil(B/2), sublane-aligned
        return B                                    # tiny batch: one full block
    return cap                                      # large batch: many big steps


# -----------------------------------------------------------------------------
# Wrapper
# -----------------------------------------------------------------------------
def city_embedding(city, w_depot, b_depot, w_city, b_city, *,
                   fused_params=None, out_dtype=None, block_rows=None):
    """city: [B, N, input_dim] -> [B, N, embed_dim].

    Weights stored pre-transposed as [input_dim, embed_dim]; biases [embed_dim].
    Row 0 of each batch uses the depot linear, rows 1..N-1 the city linear.
    Pass out_dtype=jnp.bfloat16 to halve the (dominant) HBM write traffic when
    the downstream consumer tolerates bf16; pass fused_params=make_fused_params(...)
    to avoid rebuilding the block-diagonal weight every call.
    """
    B, N, In = city.shape
    E = w_depot.shape[1]
    NE = N * E
    out_dtype = city.dtype if out_dtype is None else jnp.dtype(out_dtype)

    if fused_params is None:
        fused_params = make_fused_params(w_depot, b_depot, w_city, b_city, N)
    w_big, b_big = fused_params

    # Row-major flatten of the coords (pure reshape, layout-preserving).
    x2d = city.reshape(B, N * In)

    in_row_bytes = N * In * x2d.dtype.itemsize
    out_row_bytes = NE * jnp.dtype(out_dtype).itemsize
    weight_bytes = (w_big.size * w_big.dtype.itemsize
                    + b_big.size * b_big.dtype.itemsize)
    bt = _pick_block_rows(B, in_row_bytes, out_row_bytes, weight_bytes, block_rows)
    grid = (pl.cdiv(B, bt),)

    cost = pl.CostEstimate(
        flops=2 * B * (N * In) * NE,
        transcendentals=0,
        bytes_accessed=B * (in_row_bytes + out_row_bytes) + weight_bytes,
    )

    out_flat = pl.pallas_call(
        _city_embed_kernel,
        out_shape=jax.ShapeDtypeStruct((B, NE), out_dtype),
        grid_spec=pltpu.PrefetchScalarGridSpec(
            num_scalar_prefetch=0,
            grid=grid,
            in_specs=[
                pl.BlockSpec((bt, N * In), lambda i: (i, 0)),
                pl.BlockSpec((N * In, NE), lambda i: (0, 0)),
                pl.BlockSpec((1, NE), lambda i: (0, 0)),
            ],
            out_specs=pl.BlockSpec((bt, NE), lambda i: (i, 0)),
        ),
        compiler_params=pltpu.CompilerParams(
            dimension_semantics=("parallel",),
            vmem_limit_bytes=_VMEM_LIMIT_BYTES,
        ),
        cost_estimate=cost,
    )(x2d, w_big, b_big)

    # Pure row-major inverse of the in-kernel flattening.
    return out_flat.reshape(B, N, E)


def _reference(city, w_depot, b_depot, w_city, b_city):
    depot = city[:, 0:1] @ w_depot + b_depot
    rest = city[:, 1:] @ w_city + b_city
    return jnp.concatenate([depot, rest], axis=1)


# -----------------------------------------------------------------------------
# Demo / correctness check
# -----------------------------------------------------------------------------
if __name__ == "__main__":
    # Small shapes consistent with the module: city coords are 2-D.
    N = 8
    input_dim, hidden_dim, embed_dim = 2, 16, 32  # hidden_dim unused in forward

    key = jax.random.PRNGKey(0)
    k_c1, k_wd, k_bd, k_wc, k_bc, k_c2, k_c3 = jax.random.split(key, 7)

    # PyTorch Linear: W [out, in], b [out]; stored pre-transposed as [in, out].
    bound = 1.0 / (input_dim ** 0.5)
    w_depot = jax.random.uniform(k_wd, (input_dim, embed_dim), jnp.float32,
                                 minval=-bound, maxval=bound)
    b_depot = jax.random.uniform(k_bd, (embed_dim,), jnp.float32,
                                 minval=-bound, maxval=bound)
    w_city = jax.random.uniform(k_wc, (input_dim, embed_dim), jnp.float32,
                                minval=-bound, maxval=bound)
    b_city = jax.random.uniform(k_bc, (embed_dim,), jnp.float32,
                                minval=-bound, maxval=bound)

    # Precompute the fused block-diagonal params once and reuse them.
    fused = make_fused_params(w_depot, b_depot, w_city, b_city, N)

    # Case 1: tiny batch (single grid step, block == full array).
    B1 = 2
    city1 = jax.random.uniform(k_c1, (B1, N, input_dim), dtype=jnp.float32)
    out1 = jax.block_until_ready(
        city_embedding(city1, w_depot, b_depot, w_city, b_city, fused_params=fused))
    ref1 = _reference(city1, w_depot, b_depot, w_city, b_city)
    assert out1.shape == (B1, N, embed_dim)
    assert jnp.allclose(out1, ref1, atol=1e-5, rtol=1e-5)

    # Case 2: multi-step grid (block_rows override -> 3 full 8-row blocks).
    B2 = 24
    city2 = jax.random.uniform(k_c2, (B2, N, input_dim), dtype=jnp.float32)
    out2 = jax.block_until_ready(
        city_embedding(city2, w_depot, b_depot, w_city, b_city,
                       fused_params=fused, block_rows=8))
    ref2 = _reference(city2, w_depot, b_depot, w_city, b_city)
    assert out2.shape == (B2, N, embed_dim)
    assert jnp.allclose(out2, ref2, atol=1e-5, rtol=1e-5)

    # Case 3: ragged last block (B % bt != 0) — padded rows are discarded.
    B3 = 20
    city3 = jax.random.uniform(k_c3, (B3, N, input_dim), dtype=jnp.float32)
    out3 = jax.block_until_ready(
        city_embedding(city3, w_depot, b_depot, w_city, b_city,
                       fused_params=fused, block_rows=8))
    ref3 = _reference(city3, w_depot, b_depot, w_city, b_city)
    assert out3.shape == (B3, N, embed_dim)
    assert jnp.allclose(out3, ref3, atol=1e-5, rtol=1e-5)

    # Case 4: bf16 output path (halves HBM write traffic; looser tolerance).
    out4 = jax.block_until_ready(
        city_embedding(city2, w_depot, b_depot, w_city, b_city,
                       fused_params=fused, out_dtype=jnp.bfloat16))
    assert out4.dtype == jnp.bfloat16
    assert jnp.allclose(out4.astype(jnp.float32), ref2, atol=2e-2, rtol=2e-2)

    print("KERNEL_OK")
</pallas_src>

<mosaic_0001>
module attributes {stable_mosaic.version = 11 : i64} {
  func.func @_city_embed_kernel(%arg0: i32, %arg1: memref<2x16xf32, #tpu.memory_space<vmem>>, %arg2: memref<16x256xf32, #tpu.memory_space<vmem>>, %arg3: memref<1x256xf32, #tpu.memory_space<vmem>>, %arg4: memref<2x256xf32, #tpu.memory_space<vmem>>) attributes {dimension_semantics = [#tpu.dimension_semantics<parallel>], iteration_bounds = array<i64: 1>, scalar_prefetch = 0 : i64, scratch_operands = 0 : i64, tpu.core_type = #tpu.core_type<tc>, window_params = [{transform_indices = @transform_0, window_bounds = array<i64: 2, 16>}, {pipeline_mode = #tpu.pipeline_mode<synchronous>, transform_indices = @transform_1, window_bounds = array<i64: 16, 256>}, {pipeline_mode = #tpu.pipeline_mode<synchronous>, transform_indices = @transform_2, window_bounds = array<i64: 1, 256>}, {transform_indices = @transform_3, window_bounds = array<i64: 2, 256>}]} {
    %c0 = arith.constant 0 : index
    %c0_0 = arith.constant 0 : index
    %0 = vector.load %arg1[%c0, %c0_0] : memref<2x16xf32, #tpu.memory_space<vmem>>, vector<2x16xf32>
    %c0_1 = arith.constant 0 : index
    %c0_2 = arith.constant 0 : index
    %1 = vector.load %arg2[%c0_1, %c0_2] : memref<16x256xf32, #tpu.memory_space<vmem>>, vector<16x256xf32>
    %cst = arith.constant dense<0.000000e+00> : vector<2x256xf32>
    %2 = tpu.matmul %0, %1, %cst {dimension_numbers = #tpu.dot_dimension_numbers<[1], [0], [0], [1], [0, 0, 1, 1], [], []>} : vector<2x16xf32>, vector<16x256xf32>, vector<2x256xf32> -> vector<2x256xf32>
    %c0_3 = arith.constant 0 : index
    %c0_4 = arith.constant 0 : index
    %3 = vector.load %arg3[%c0_3, %c0_4] : memref<1x256xf32, #tpu.memory_space<vmem>>, vector<1x256xf32>
    %4 = vector.broadcast %3 : vector<1x256xf32> to vector<2x256xf32>
    %5 = arith.addf %2, %4 : vector<2x256xf32>
    %c0_5 = arith.constant 0 : index
    %c0_6 = arith.constant 0 : index
    %6 = vector.load %arg4[%c0_5, %c0_6] : memref<2x256xf32, #tpu.memory_space<vmem>>, vector<2x256xf32>
    tpu.vector_store %arg4[%c0_5, %c0_6], %5 {strides = array<i32>} : memref<2x256xf32, #tpu.memory_space<vmem>>, vector<2x256xf32>,
    return
  }
  func.func @transform_0(%arg0: i32) -> (i32, i32) {
    %c0_i32 = arith.constant 0 : i32
    %c0_i32_0 = arith.constant 0 : i32
    return %arg0, %c0_i32 : i32, i32
  }
  func.func @transform_1(%arg0: i32) -> (i32, i32) {
    %c0_i32 = arith.constant 0 : i32
    %c0_i32_0 = arith.constant 0 : i32
    %c0_i32_1 = arith.constant 0 : i32
    return %c0_i32, %c0_i32_0 : i32, i32
  }
  func.func @transform_2(%arg0: i32) -> (i32, i32) {
    %c0_i32 = arith.constant 0 : i32
    %c0_i32_0 = arith.constant 0 : i32
    %c0_i32_1 = arith.constant 0 : i32
    return %c0_i32, %c0_i32_0 : i32, i32
  }
  func.func @transform_3(%arg0: i32) -> (i32, i32) {
    %c0_i32 = arith.constant 0 : i32
    %c0_i32_0 = arith.constant 0 : i32
    return %arg0, %c0_i32 : i32, i32
  }
}

</mosaic_0001>

<llo_original>
// kernel: tpu_custom_call.1
$region0: #{tpu_custom_call.1}
  #allocation0 [shape = 'u32[]', space=smem, size = 0x4, offset = 0x4, fixed_abs, tag = 'smem constant byte address 0x4 - core index']
  #allocation1 [shape = 'u32[144,128]{1,0:T(1,128)}', space=vmem, size = 0x12000, scoped, tag = 'internal scratch']
  %s0 = inlined_call_operand.hbm [shape: f32[2,16], index: 0, kind: input, shape index: {}]
  %s1 = inlined_call_operand.hbm [shape: f32[16,256], index: 1, kind: input, shape index: {}]
  %s2 = inlined_call_operand.vmem [shape: f32[1,256], index: 2, kind: input, shape index: {}]
  %s3 = inlined_call_operand.hbm [shape: f32[2,256], index: 3, kind: output, shape index: {}]
  %s4 = sld [smem:[#allocation0]]
  $region30: #{tpu_custom_call.1} parent=0
    _
  %s6 = ssub.s32 1, %s4
  %s7 = scalar_select 0, %s6, %s4
  $region1: #{tpu_custom_call.1} parent=0
    #allocation2 [shape = 'u8[1024]{0}', space=vmem, size = 0x400, scoped, tag = 'input window, operand 0, single buffered']
    #allocation3 [shape = 's32[1]{0}', space=sflag, size = 0x4, scoped, tag = 'scoped memory for tpu_custom_call.1']
    #allocation4 [shape = 's32[1]{0}', space=sflag, size = 0x4, scoped, tag = 'scoped memory for tpu_custom_call.1']
    #allocation5 [shape = 'u8[16384]{0}', space=vmem, size = 0x4000, scoped, tag = 'input window, operand 1, single buffered']
    #allocation6 [shape = 's32[1]{0}', space=sflag, size = 0x4, scoped, tag = 'scoped memory for tpu_custom_call.1']
    #allocation7 [shape = 'u8[2048]{0}', space=vmem, size = 0x800, scoped, tag = 'output window, operand 0, single buffered']
    %8 = vsyncpa [#allocation3], 0
    %9 = vsyncpa [#allocation6], 0
    %10 = vsyncpa [#allocation4], 0
    // Predicated region
    $region2: #{tpu_custom_call.1} parent=1 // pred_check
      _
    $region3: #{tpu_custom_call.1} parent=1 // pred_check_branch
      %12 = sbr.rel (0) target = $region5
    $region4: #{tpu_custom_call.1} parent=1 // pred_region
      %s14 = ssub.s32 32, 32
      %15 = vsyncadd [#allocation3], %s14
      %s17 = sshll.u32 [#allocation2], 4
      %s18 = int_to_ptr.vmem [resolvable:$true] %s17
      %20 = dma.hbm_to_vmem [thread:$0]  %s0, 32, %s18, [#allocation3]
    $region5: #{tpu_custom_call.1} parent=1 // pred_fallthru
      _
    // Predicated region
    $region6: #{tpu_custom_call.1} parent=1 // pred_check
      _
    $region7: #{tpu_custom_call.1} parent=1 // pred_check_branch
      %22 = sbr.rel (0) target = $region9
    $region8: #{tpu_custom_call.1} parent=1 // pred_region
      %s24 = ssub.s32 512, 512
      %25 = vsyncadd [#allocation6], %s24
      %s26 = sshll.u32 [#allocation5], 4
      %s27 = int_to_ptr.vmem [resolvable:$true] %s26
      %32 = dma.hbm_to_vmem [thread:$0]  %s1, 512, %s27, [#allocation6], 256, 256, 16
    $region9: #{tpu_custom_call.1} parent=1 // pred_fallthru
      _
    // Predicated region
    $region10: #{tpu_custom_call.1} parent=1 // pred_check
      _
    $region11: #{tpu_custom_call.1} parent=1 // pred_check_branch
      %34 = sbr.rel (0) target = $region13
    $region12: #{tpu_custom_call.1} parent=1 // pred_region
      _
    $region13: #{tpu_custom_call.1} parent=1 // pred_fallthru
      _
    // Predicated region
    $region14: #{tpu_custom_call.1} parent=1 // pred_check
      _
    $region15: #{tpu_custom_call.1} parent=1 // pred_check_branch
      %36 = sbr.rel (0) target = $region17
    $region16: #{tpu_custom_call.1} parent=1 // pred_region
      %37 = dma.done [#allocation3], 32
    $region17: #{tpu_custom_call.1} parent=1 // pred_fallthru
      _
    // Predicated region
    $region18: #{tpu_custom_call.1} parent=1 // pred_check
      _
    $region19: #{tpu_custom_call.1} parent=1 // pred_check_branch
      %39 = sbr.rel (0) target = $region21
    $region20: #{tpu_custom_call.1} parent=1 // pred_region
      %40 = dma.done [#allocation6], 512
    $region21: #{tpu_custom_call.1} parent=1 // pred_fallthru
      _
    %v41 = vld [vmem:[#allocation2] sm:$0x3]
    %v42 = vld [vmem:[#allocation5] sm:$0xff]
    %v43 = vld [vmem:[#allocation5 + $0x8] sm:$0xff]
    %v44 = vld [vmem:[#allocation5 + $0x10] sm:$0xff]
    %v45 = vld [vmem:[#allocation5 + $0x18] sm:$0xff]
    %v46 = vld [vmem:[%s2] sm:$0x3]
    %v48 = vlaneseq
    %v49 = vshrl.u32 %v48, 7
    %v50 = vsub.s32 0, %v49
    %v51 = vrot.slane %v46, %v50
    %v52 = vlaneseq
    %v53 = vshrl.u32 %v52, 7
    %v54 = vsub.s32 1, %v53
    %v55 = vrot.slane %v46, %v54
    %vm58 = vcmask 130048
    %v60 = vsel %vm58, %v41, 0
    %62 = vmatprep.subr.mxu0 0.0
    %63 = vmatpush1.msra.mxu0 0.0
    %64 = vmatprep.subr.mxu0 0.0
    %65 = vmatpush1.msra.mxu0 0.0
    %66 = vmatprep.subr.mxu0 0.0
    %67 = vmatpush1.msra.mxu0 0.0
    %68 = vmatprep.subr.mxu0 0.0
    %69 = vmatpush1.msra.mxu0 0.0
    %70 = vmatprep.subr.mxu0 0.0
    %71 = vmatpush1.msra.mxu0 0.0
    %72 = vmatprep.subr.mxu0 0.0
    %73 = vmatpush1.msra.mxu0 0.0
    %74 = vmatprep.subr.mxu0 0.0
    %75 = vmatpush1.msra.mxu0 0.0
    %76 = vmatprep.subr.mxu0 0.0
    %77 = vmatpush1.msra.mxu0 0.0
    %78 = vmatprep.subr.mxu0 0.0
    %79 = vmatpush1.msra.mxu0 0.0
    %80 = vmatprep.subr.mxu0 0.0
    %81 = vmatpush1.msra.mxu0 0.0
    %82 = vmatprep.subr.mxu0 0.0
    %83 = vmatpush1.msra.mxu0 0.0
    %84 = vmatprep.subr.mxu0 0.0
    %85 = vmatpush1.msra.mxu0 0.0
    %86 = vmatprep.subr.mxu0 0.0
    %87 = vmatpush1.msra.mxu0 0.0
    %88 = vmatprep.subr.mxu0 0.0
    %89 = vmatpush1.msra.mxu0 0.0
    %90 = vmatprep.subr.mxu0 %v45
    %91 = vmatpush1.msra.mxu0 %v44
    %92 = vmatprep.subr.mxu0 %v43
    %93 = vmatpush1.msra.mxu0 %v42
    %94 = vmatprep.subr.mxu0 0.0
    %95 = vmatpush2.msra.mxu0 0.0
    %96 = vmatprep.subr.mxu0 0.0
    %97 = vmatpush2.msra.mxu0 0.0
    %98 = vmatprep.subr.mxu0 0.0
    %99 = vmatpush2.msra.mxu0 0.0
    %100 = vmatprep.subr.mxu0 0.0
    %101 = vmatpush2.msra.mxu0 0.0
    %102 = vmatprep.subr.mxu0 0.0
    %103 = vmatpush2.msra.mxu0 0.0
    %104 = vmatprep.subr.mxu0 0.0
    %105 = vmatpush2.msra.mxu0 0.0
    %106 = vmatprep.subr.mxu0 0.0
    %107 = vmatpush2.msra.mxu0 0.0
    %108 = vmatprep.subr.mxu0 0.0
    %109 = vmatpush2.msra.mxu0 0.0
    %110 = vmatprep.subr.mxu0 0.0
    %111 = vmatpush2.msra.mxu0 0.0
    %112 = vmatprep.subr.mxu0 0.0
    %113 = vmatpush2.msra.mxu0 0.0
    %114 = vmatprep.subr.mxu0 0.0
    %115 = vmatpush2.msra.mxu0 0.0
    %116 = vmatprep.subr.mxu0 0.0
    %117 = vmatpush2.msra.mxu0 0.0
    %118 = vmatprep.subr.mxu0 0.0
    %119 = vmatpush2.msra.mxu0 0.0
    %120 = vmatprep.subr.mxu0 0.0
    %121 = vmatpush2.msra.mxu0 0.0
    %122 = vmatprep.subr.mxu0 0.0
    %123 = vmatpush2.msra.mxu0 0.0
    %124 = vmatprep.subr.mxu0 0.0
    %125 = vmatpush2.msra.mxu0 0.0
    %126 = vmatprep.mubr.f32.mxu0 0.0
    %127 = vmatmul.mubr.f32.gmra.mxu0 %v60
    %v128 = vpop.f32.mrf.mxu0
    %v129 = vadd.f32 %v51, %v128
    %v130 = vpop.f32.mrf.mxu0
    %v131 = vadd.f32 %v55, %v130
    %132 = vdwg.mxu0
    %v135 = vcombine.low %v129, %v131
    %v137 = vunpack.c.l.s4 1983009808
    %v138 = vunpack.c.0.s8 %v137
    %v139 = vlaneseq
    %v140 = vshrl.u32 %v139, 7
    %v141 = vsub.s32 %v138, %v140
    %v142 = vrot.slane %v135, %v141
    %144 = vst [vmem:[#allocation7] sm:$0xf] %v142
    // Predicated region
    $region22: #{tpu_custom_call.1} parent=1 // pred_check
      _
    $region23: #{tpu_custom_call.1} parent=1 // pred_check_branch
      %146 = sbr.rel (0) target = $region25
    $region24: #{tpu_custom_call.1} parent=1 // pred_region
      %s148 = ssub.s32 64, 64
      %149 = vsyncadd [#allocation4], %s148
      %s151 = sshll.u32 [#allocation7], 4
      %s152 = int_to_ptr.vmem [resolvable:$true] %s151
      %154 = dma.vmem_to_hbm [thread:$0]  %s152, 64, %s3, [#allocation4]
    $region25: #{tpu_custom_call.1} parent=1 // pred_fallthru
      _
    // Predicated region
    $region26: #{tpu_custom_call.1} parent=1 // pred_check
      _
    $region27: #{tpu_custom_call.1} parent=1 // pred_check_branch
      %156 = sbr.rel (0) target = $region29
    $region28: #{tpu_custom_call.1} parent=1 // pred_region
      %157 = dma.done [#allocation4], 64
    $region29: #{tpu_custom_call.1} parent=1 // pred_fallthru
      _
    %158 = vsyncpa [#allocation3], 1
    %159 = vsyncpa [#allocation6], 1
    %160 = vsyncpa [#allocation4], 1

</llo_original>
